<compile_context>
chip_gen: v7x
topology: tpu7x:2x2x1
jax: 0.10.0
libtpu: 0.0.40
codegen_flags: <defaults>
</compile_context>

<pallas_src>
import jax
import jax.numpy as jnp
from jax.experimental import pallas as pl
from jax.experimental.pallas import tpu as pltpu

LN_EPS = 1e-5          # torch.nn.LayerNorm default
HEAD_PAD = 128         # lane-dense padded width of the folded Q head


def _round_up(n: int, m: int) -> int:
    return ((n + m - 1) // m) * m


def dueling_qnet_kernel(
    x_ref,      # (TM, I)     f32   batch tile (cast to bf16 in-kernel)
    w1_ref,     # (I, H)      bf16
    vecs_ref,   # (8, H)      f32   rows: 0=b1, 1=ln_g, 2=ln_b, 3=b2, 4=bq
    w2_ref,     # (H, H)      bf16
    wq_ref,     # (H, 128)    bf16  folded dueling head (pad cols exactly 0)
    alpha_ref,  # (1, 1)      f32   PReLU slope, in SMEM
    q_ref,      # (TM, 128)   f32   Q in cols [0..O-1], zeros elsewhere
):
    alpha = alpha_ref[0, 0]            # scalar read from SMEM
    b1   = vecs_ref[0:1, :]
    ln_g = vecs_ref[1:2, :]
    ln_b = vecs_ref[2:3, :]
    b2   = vecs_ref[3:4, :]
    bq   = vecs_ref[4:5, :]

    # linear1: (TM, I) @ (I, H) on the MXU, f32 accumulate.
    x = x_ref[...].astype(jnp.bfloat16)
    h1 = jnp.dot(x, w1_ref[...], preferred_element_type=jnp.float32) + b1

    # LayerNorm over the hidden dim (f32, biased variance + eps like torch).
    mu = jnp.mean(h1, axis=-1, keepdims=True)
    var = jnp.mean(jnp.square(h1 - mu), axis=-1, keepdims=True)
    h1n = (h1 - mu) * jax.lax.rsqrt(var + LN_EPS) * ln_g + ln_b

    # PReLU (single shared learnable slope — PyTorch default).
    h1p = jnp.where(h1n > 0, h1n, alpha * h1n)

    # linear2 + PReLU.
    h2 = jnp.dot(h1p.astype(jnp.bfloat16), w2_ref[...],
                 preferred_element_type=jnp.float32) + b2
    h2p = jnp.where(h2 > 0, h2, alpha * h2)

    # Dueling V/A/mean-subtract is folded into wq/bq offline: this IS Q.
    q = jnp.dot(h2p.astype(jnp.bfloat16), wq_ref[...],
                preferred_element_type=jnp.float32) + bq
    q_ref[...] = q.astype(q_ref.dtype)


def prepare_params(params, output_size):
    """Offline folding of the dueling combine into a single lane-dense head.

    Q_j = V + (A_j - mean_k A_k) is linear in x, so:
        Wq[:, j] = wa[:, j] - mean_k wa[:, k] + wv[:, 0]
        bq[j]    = ba[j]    - mean_k ba[k]    + bv
    Padded columns [output_size..127] are exactly zero.
    """
    H = params["w2"].shape[0]
    O = output_size
    assert O <= HEAD_PAD, "output_size must be <= 128"
    assert H == HEAD_PAD, "hidden_size must be 128 (V/A are Linear(128, ...))"

    wa, wv = params["wa"], params["wv"]          # (H, O), (H, 1)
    ba, bv = params["ba"], params["bv"]          # (1, O), (1, 1)
    wq_real = wa - jnp.mean(wa, axis=1, keepdims=True) + wv
    bq_real = ba - jnp.mean(ba, axis=1, keepdims=True) + bv

    wq = jnp.zeros((H, HEAD_PAD), jnp.float32).at[:, :O].set(wq_real)
    bq = jnp.zeros((1, HEAD_PAD), jnp.float32).at[:, :O].set(bq_real)

    # Pack the five (1, 128) vectors into one (8, 128) block (single DMA).
    vecs = jnp.zeros((8, H), jnp.float32)
    vecs = vecs.at[0].set(params["b1"][0])
    vecs = vecs.at[1].set(params["ln_g"][0])
    vecs = vecs.at[2].set(params["ln_b"][0])
    vecs = vecs.at[3].set(params["b2"][0])
    vecs = vecs.at[4].set(bq[0])

    return {
        "w1": params["w1"].astype(jnp.bfloat16),
        "w2": params["w2"].astype(jnp.bfloat16),
        "wq": wq.astype(jnp.bfloat16),
        "vecs": vecs,
        "alpha": params["alpha"],
    }


def dueling_qnet_forward(x, kp, output_size, *, block_m=512, return_padded=False):
    """Full Dueling Q-Net forward pass in one Pallas kernel.

    x: (B, input_size) float32; kp: prepare_params(...) output.
    block_m: batch-tile ceiling. 512 gets close to the HBM roofline while the
    VMEM footprint stays tiny (< 1 MiB double-buffered), safe on every
    generation including v7x's 64 MiB VMEM.
    return_padded: if True, return the lane-dense (B, 128) buffer (pad columns
    are exact zeros); otherwise slice to (B, output_size).
    """
    B, I = x.shape
    H = kp["w1"].shape[1]
    HEAD = kp["wq"].shape[1]

    # Tile so the grid has >= 2 steps whenever the batch allows (both TCs on
    # v7x via the "parallel" axis); TM is a multiple of 8 (f32 sublane).
    TM = max(8, min(block_m, _round_up(pl.cdiv(B, 2), 8)))
    grid_m = pl.cdiv(B, TM)

    row = lambda i: (i, 0)     # batch-tiled arrays
    const = lambda i: (0, 0)   # resident weights / packed biases

    flops = 2 * B * (I * H + H * H + H * HEAD)
    bytes_accessed = (
        B * I * 4
        + int(kp["w1"].size) * 2 + int(kp["w2"].size) * 2 + int(kp["wq"].size) * 2
        + int(kp["vecs"].size) * 4 + 4
        + B * HEAD * 4
    )

    q_pad = pl.pallas_call(
        dueling_qnet_kernel,
        out_shape=jax.ShapeDtypeStruct((B, HEAD), jnp.float32),
        grid=(grid_m,),
        in_specs=[
            pl.BlockSpec((TM, I), row),        # x (f32, cast in-kernel)
            pl.BlockSpec((I, H), const),       # w1
            pl.BlockSpec((8, H), const),       # packed b1/ln_g/ln_b/b2/bq
            pl.BlockSpec((H, H), const),       # w2
            pl.BlockSpec((H, HEAD), const),    # folded dueling head
            pl.BlockSpec((1, 1), const, memory_space=pltpu.MemorySpace.SMEM),
        ],
        out_specs=pl.BlockSpec((TM, HEAD), row),
        compiler_params=pltpu.CompilerParams(
            dimension_semantics=("parallel",)),
        cost_estimate=pl.CostEstimate(
            flops=flops, transcendentals=B, bytes_accessed=bytes_accessed),
    )(x, kp["w1"], kp["vecs"], kp["w2"], kp["wq"], kp["alpha"])

    if return_padded:
        return q_pad                     # (B, 128), cols >= output_size are 0
    return q_pad[:, :output_size]


def init_params(key, input_size, hidden_size, output_size):
    """Deterministic synthetic parameter init (PyTorch-Linear-style scaling)."""
    assert hidden_size == 128, "module only type-checks with hidden_size == 128"
    ks = jax.random.split(key, 8)

    def linear(kw, kb, fan_in, fan_out):
        bound = 1.0 / jnp.sqrt(jnp.float32(fan_in))
        w = jax.random.uniform(kw, (fan_in, fan_out), jnp.float32, -bound, bound)
        b = jax.random.uniform(kb, (1, fan_out), jnp.float32, -bound, bound)
        return w, b

    w1, b1 = linear(ks[0], ks[1], input_size, hidden_size)
    w2, b2 = linear(ks[2], ks[3], hidden_size, hidden_size)
    wv, bv = linear(ks[4], ks[5], hidden_size, 1)
    wa, ba = linear(ks[6], ks[7], hidden_size, output_size)

    return {
        "w1": w1, "b1": b1,
        "ln_g": jnp.ones((1, hidden_size), jnp.float32),   # LayerNorm weight
        "ln_b": jnp.zeros((1, hidden_size), jnp.float32),  # LayerNorm bias
        "w2": w2, "b2": b2,
        "wv": wv, "bv": bv,
        "wa": wa, "ba": ba,
        "alpha": jnp.full((1, 1), 0.25, jnp.float32),       # PReLU default
    }
    # TODO(synk): self.linear4 (Linear(256, 256)) is unused in forward(); omitted.


def _reference_forward_f32(x, p):
    """Pure-f32 JAX reference of the PyTorch module's forward()."""
    a = p["alpha"][0, 0]
    h1 = jnp.dot(x, p["w1"], precision=jax.lax.Precision.HIGHEST) + p["b1"]
    mu = h1.mean(-1, keepdims=True)
    var = ((h1 - mu) ** 2).mean(-1, keepdims=True)
    h1n = (h1 - mu) * jax.lax.rsqrt(var + LN_EPS) * p["ln_g"] + p["ln_b"]
    h1p = jnp.where(h1n > 0, h1n, a * h1n)
    h2 = jnp.dot(h1p, p["w2"], precision=jax.lax.Precision.HIGHEST) + p["b2"]
    h2p = jnp.where(h2 > 0, h2, a * h2)
    v = jnp.dot(h2p, p["wv"], precision=jax.lax.Precision.HIGHEST) + p["bv"]
    adv = jnp.dot(h2p, p["wa"], precision=jax.lax.Precision.HIGHEST) + p["ba"]
    return v + (adv - adv.mean(1, keepdims=True))


if __name__ == "__main__":
    # Small shapes consistent with the module (hidden must be 128).
    B, INPUT, HIDDEN, OUTPUT = 8, 32, 128, 8

    key = jax.random.PRNGKey(0)
    kx, kparams_key = jax.random.split(key)
    x = jax.random.normal(kx, (B, INPUT), jnp.float32)

    params = init_params(kparams_key, INPUT, HIDDEN, OUTPUT)
    kernel_params = prepare_params(params, OUTPUT)

    q_pad = dueling_qnet_forward(x, kernel_params, OUTPUT, return_padded=True)
    q_pad = jax.block_until_ready(q_pad)
    q = q_pad[:, :OUTPUT]

    q_ref = _reference_forward_f32(x, params)
    assert q.shape == (B, OUTPUT)
    assert bool(jnp.all(q_pad[:, OUTPUT:] == 0.0)), "pad columns not exact zero"
    assert jnp.allclose(q, q_ref, atol=3e-2, rtol=3e-2), "mismatch vs f32 reference"

    print("KERNEL_OK")
</pallas_src>

<mosaic_0001>
module attributes {stable_mosaic.version = 11 : i64} {
  func.func @dueling_qnet_kernel(%arg0: i32, %arg1: memref<8x32xf32, #tpu.memory_space<vmem>>, %arg2: memref<32x128xbf16, #tpu.memory_space<vmem>>, %arg3: memref<8x128xf32, #tpu.memory_space<vmem>>, %arg4: memref<128x128xbf16, #tpu.memory_space<vmem>>, %arg5: memref<128x128xbf16, #tpu.memory_space<vmem>>, %arg6: memref<1x1xf32, #tpu.memory_space<smem>>, %arg7: memref<8x128xf32, #tpu.memory_space<vmem>>) attributes {dimension_semantics = [#tpu.dimension_semantics<parallel>], iteration_bounds = array<i64: 1>, scalar_prefetch = 0 : i64, scratch_operands = 0 : i64, tpu.core_type = #tpu.core_type<tc>, window_params = [{transform_indices = @transform_0, window_bounds = array<i64: 8, 32>}, {pipeline_mode = #tpu.pipeline_mode<synchronous>, transform_indices = @transform_1, window_bounds = array<i64: 32, 128>}, {pipeline_mode = #tpu.pipeline_mode<synchronous>, transform_indices = @transform_2, window_bounds = array<i64: 8, 128>}, {pipeline_mode = #tpu.pipeline_mode<synchronous>, transform_indices = @transform_3, window_bounds = array<i64: 128, 128>}, {pipeline_mode = #tpu.pipeline_mode<synchronous>, transform_indices = @transform_4, window_bounds = array<i64: 128, 128>}, {transform_indices = @transform_5, window_bounds = array<i64: 1, 1>}, {transform_indices = @transform_6, window_bounds = array<i64: 8, 128>}]} {
    %c0 = arith.constant 0 : index
    %c0_0 = arith.constant 0 : index
    %0 = memref.load %arg6[%c0, %c0_0] : memref<1x1xf32, #tpu.memory_space<smem>>
    %c0_1 = arith.constant 0 : index
    %c0_2 = arith.constant 0 : index
    %1 = vector.load %arg3[%c0_1, %c0_2] : memref<8x128xf32, #tpu.memory_space<vmem>>, vector<1x128xf32>
    %c1 = arith.constant 1 : index
    %c0_3 = arith.constant 0 : index
    %2 = vector.load %arg3[%c1, %c0_3] : memref<8x128xf32, #tpu.memory_space<vmem>>, vector<1x128xf32>
    %c2 = arith.constant 2 : index
    %c0_4 = arith.constant 0 : index
    %3 = vector.load %arg3[%c2, %c0_4] : memref<8x128xf32, #tpu.memory_space<vmem>>, vector<1x128xf32>
    %c3 = arith.constant 3 : index
    %c0_5 = arith.constant 0 : index
    %4 = vector.load %arg3[%c3, %c0_5] : memref<8x128xf32, #tpu.memory_space<vmem>>, vector<1x128xf32>
    %c4 = arith.constant 4 : index
    %c0_6 = arith.constant 0 : index
    %5 = vector.load %arg3[%c4, %c0_6] : memref<8x128xf32, #tpu.memory_space<vmem>>, vector<1x128xf32>
    %c0_7 = arith.constant 0 : index
    %c0_8 = arith.constant 0 : index
    %6 = vector.load %arg1[%c0_7, %c0_8] : memref<8x32xf32, #tpu.memory_space<vmem>>, vector<8x32xf32>
    %7 = arith.truncf %6 : vector<8x32xf32> to vector<8x32xbf16>
    %c0_9 = arith.constant 0 : index
    %c0_10 = arith.constant 0 : index
    %8 = vector.load %arg2[%c0_9, %c0_10] : memref<32x128xbf16, #tpu.memory_space<vmem>>, vector<32x128xbf16>
    %cst = arith.constant dense<0.000000e+00> : vector<8x128xf32>
    %9 = tpu.matmul %7, %8, %cst {dimension_numbers = #tpu.dot_dimension_numbers<[1], [0], [0], [1], [0, 0, 1, 1], [], []>} : vector<8x32xbf16>, vector<32x128xbf16>, vector<8x128xf32> -> vector<8x128xf32>
    %10 = vector.broadcast %1 : vector<1x128xf32> to vector<8x128xf32>
    %11 = arith.addf %9, %10 : vector<8x128xf32>
    %cst_11 = arith.constant dense<0.000000e+00> : vector<8xf32>
    %12 = vector.multi_reduction <add>, %11, %cst_11 [1] : vector<8x128xf32> to vector<8xf32>
    %13 = vector.shape_cast %12 : vector<8xf32> to vector<8x1xf32>
    %cst_12 = arith.constant 1.280000e+02 : f32
    %14 = vector.broadcast %cst_12 : f32 to vector<8x1xf32>
    %15 = arith.divf %13, %14 : vector<8x1xf32>
    %16 = vector.broadcast %15 : vector<8x1xf32> to vector<8x128xf32>
    %17 = arith.subf %11, %16 : vector<8x128xf32>
    %18 = arith.mulf %17, %17 : vector<8x128xf32>
    %cst_13 = arith.constant dense<0.000000e+00> : vector<8xf32>
    %19 = vector.multi_reduction <add>, %18, %cst_13 [1] : vector<8x128xf32> to vector<8xf32>
    %20 = vector.shape_cast %19 : vector<8xf32> to vector<8x1xf32>
    %cst_14 = arith.constant 1.280000e+02 : f32
    %21 = vector.broadcast %cst_14 : f32 to vector<8x1xf32>
    %22 = arith.divf %20, %21 : vector<8x1xf32>
    %23 = vector.broadcast %15 : vector<8x1xf32> to vector<8x128xf32>
    %24 = arith.subf %11, %23 : vector<8x128xf32>
    %cst_15 = arith.constant 9.99999974E-6 : f32
    %25 = vector.broadcast %cst_15 : f32 to vector<8x1xf32>
    %26 = arith.addf %22, %25 : vector<8x1xf32>
    %27 = math.rsqrt %26 : vector<8x1xf32>
    %28 = vector.broadcast %27 : vector<8x1xf32> to vector<8x128xf32>
    %29 = arith.mulf %24, %28 : vector<8x128xf32>
    %30 = vector.broadcast %2 : vector<1x128xf32> to vector<8x128xf32>
    %31 = arith.mulf %29, %30 : vector<8x128xf32>
    %32 = vector.broadcast %3 : vector<1x128xf32> to vector<8x128xf32>
    %33 = arith.addf %31, %32 : vector<8x128xf32>
    %cst_16 = arith.constant 0.000000e+00 : f32
    %34 = vector.broadcast %cst_16 : f32 to vector<8x128xf32>
    %35 = arith.cmpf ogt, %33, %34 : vector<8x128xf32>
    %36 = vector.broadcast %0 : f32 to vector<8x128xf32>
    %37 = arith.mulf %36, %33 : vector<8x128xf32>
    %38 = arith.select %35, %33, %37 : vector<8x128xi1>, vector<8x128xf32>
    %39 = arith.truncf %38 : vector<8x128xf32> to vector<8x128xbf16>
    %c0_17 = arith.constant 0 : index
    %c0_18 = arith.constant 0 : index
    %40 = vector.load %arg4[%c0_17, %c0_18] : memref<128x128xbf16, #tpu.memory_space<vmem>>, vector<128x128xbf16>
    %cst_19 = arith.constant dense<0.000000e+00> : vector<8x128xf32>
    %41 = tpu.matmul %39, %40, %cst_19 {dimension_numbers = #tpu.dot_dimension_numbers<[1], [0], [0], [1], [0, 0, 1, 1], [], []>} : vector<8x128xbf16>, vector<128x128xbf16>, vector<8x128xf32> -> vector<8x128xf32>
    %42 = vector.broadcast %4 : vector<1x128xf32> to vector<8x128xf32>
    %43 = arith.addf %41, %42 : vector<8x128xf32>
    %cst_20 = arith.constant 0.000000e+00 : f32
    %44 = vector.broadcast %cst_20 : f32 to vector<8x128xf32>
    %45 = arith.cmpf ogt, %43, %44 : vector<8x128xf32>
    %46 = vector.broadcast %0 : f32 to vector<8x128xf32>
    %47 = arith.mulf %46, %43 : vector<8x128xf32>
    %48 = arith.select %45, %43, %47 : vector<8x128xi1>, vector<8x128xf32>
    %49 = arith.truncf %48 : vector<8x128xf32> to vector<8x128xbf16>
    %c0_21 = arith.constant 0 : index
    %c0_22 = arith.constant 0 : index
    %50 = vector.load %arg5[%c0_21, %c0_22] : memref<128x128xbf16, #tpu.memory_space<vmem>>, vector<128x128xbf16>
    %cst_23 = arith.constant dense<0.000000e+00> : vector<8x128xf32>
    %51 = tpu.matmul %49, %50, %cst_23 {dimension_numbers = #tpu.dot_dimension_numbers<[1], [0], [0], [1], [0, 0, 1, 1], [], []>} : vector<8x128xbf16>, vector<128x128xbf16>, vector<8x128xf32> -> vector<8x128xf32>
    %52 = vector.broadcast %5 : vector<1x128xf32> to vector<8x128xf32>
    %53 = arith.addf %51, %52 : vector<8x128xf32>
    %c0_24 = arith.constant 0 : index
    %c0_25 = arith.constant 0 : index
    %54 = vector.load %arg7[%c0_24, %c0_25] : memref<8x128xf32, #tpu.memory_space<vmem>>, vector<8x128xf32>
    tpu.vector_store %arg7[%c0_24, %c0_25], %53 {strides = array<i32>} : memref<8x128xf32, #tpu.memory_space<vmem>>, vector<8x128xf32>,
    return
  }
  func.func @transform_0(%arg0: i32) -> (i32, i32) {
    %c0_i32 = arith.constant 0 : i32
    %c0_i32_0 = arith.constant 0 : i32
    return %arg0, %c0_i32 : i32, i32
  }
  func.func @transform_1(%arg0: i32) -> (i32, i32) {
    %c0_i32 = arith.constant 0 : i32
    %c0_i32_0 = arith.constant 0 : i32
    %c0_i32_1 = arith.constant 0 : i32
    return %c0_i32, %c0_i32_0 : i32, i32
  }
  func.func @transform_2(%arg0: i32) -> (i32, i32) {
    %c0_i32 = arith.constant 0 : i32
    %c0_i32_0 = arith.constant 0 : i32
    %c0_i32_1 = arith.constant 0 : i32
    return %c0_i32, %c0_i32_0 : i32, i32
  }
  func.func @transform_3(%arg0: i32) -> (i32, i32) {
    %c0_i32 = arith.constant 0 : i32
    %c0_i32_0 = arith.constant 0 : i32
    %c0_i32_1 = arith.constant 0 : i32
    return %c0_i32, %c0_i32_0 : i32, i32
  }
  func.func @transform_4(%arg0: i32) -> (i32, i32) {
    %c0_i32 = arith.constant 0 : i32
    %c0_i32_0 = arith.constant 0 : i32
    %c0_i32_1 = arith.constant 0 : i32
    return %c0_i32, %c0_i32_0 : i32, i32
  }
  func.func @transform_5(%arg0: i32) -> (i32, i32) {
    %c0_i32 = arith.constant 0 : i32
    %c0_i32_0 = arith.constant 0 : i32
    %c0_i32_1 = arith.constant 0 : i32
    return %c0_i32, %c0_i32_0 : i32, i32
  }
  func.func @transform_6(%arg0: i32) -> (i32, i32) {
    %c0_i32 = arith.constant 0 : i32
    %c0_i32_0 = arith.constant 0 : i32
    return %arg0, %c0_i32 : i32, i32
  }
}

</mosaic_0001>

<llo_original>
// kernel: tpu_custom_call.1
$region0: #{tpu_custom_call.1}
  #allocation0 [shape = 'u32[]', space=smem, size = 0x4, offset = 0x4, fixed_abs, tag = 'smem constant byte address 0x4 - core index']
  #allocation1 [shape = 'u32[144,128]{1,0:T(1,128)}', space=vmem, size = 0x12000, scoped, tag = 'internal scratch']
  #allocation2 [shape = 'f32[1,1]{1,0:T(1,128)S(6)}', space=smem, size = 0x200, scoped, tag = 'scoped memory for tpu_custom_call.1']
  %s0 = inlined_call_operand.hbm [shape: f32[8,32], index: 0, kind: input, shape index: {}]
  %s1 = inlined_call_operand.hbm [shape: bf16[32,128], index: 1, kind: input, shape index: {}]
  %s2 = inlined_call_operand.vmem [shape: f32[8,128], index: 2, kind: input, shape index: {}]
  %s3 = inlined_call_operand.hbm [shape: bf16[128,128], index: 3, kind: input, shape index: {}]
  %s4 = inlined_call_operand.hbm [shape: bf16[128,128], index: 4, kind: input, shape index: {}]
  %s5 = inlined_call_operand.<no memory space> [shape: f32[1,1], index: 5, kind: input, shape index: {}]
  %s6 = inlined_call_operand.hbm [shape: f32[8,128], index: 6, kind: output, shape index: {}]
  %s7 = sld [smem:[#allocation0]]
  $region50: #{tpu_custom_call.1} parent=0
    _
  %s9 = ssub.s32 1, %s7
  %s10 = scalar_select 0, %s9, %s7
  %11 = sst [smem:[#allocation2]] %s5
  $region1: #{tpu_custom_call.1} parent=0
    #allocation3 [shape = 'u8[4096]{0}', space=vmem, size = 0x1000, scoped, tag = 'input window, operand 0, single buffered']
    #allocation4 [shape = 's32[1]{0}', space=sflag, size = 0x4, scoped, tag = 'scoped memory for tpu_custom_call.1']
    #allocation5 [shape = 's32[1]{0}', space=sflag, size = 0x4, scoped, tag = 'scoped memory for tpu_custom_call.1']
    #allocation6 [shape = 'u8[8192]{0}', space=vmem, size = 0x2000, scoped, tag = 'input window, operand 1, single buffered']
    #allocation7 [shape = 's32[1]{0}', space=sflag, size = 0x4, scoped, tag = 'scoped memory for tpu_custom_call.1']
    #allocation8 [shape = 'u8[32768]{0}', space=vmem, size = 0x8000, scoped, tag = 'input window, operand 3, single buffered']
    #allocation9 [shape = 'u8[32768]{0}', space=vmem, size = 0x8000, scoped, tag = 'input window, operand 4, single buffered']
    #allocation10 [shape = 's32[1]{0}', space=sflag, size = 0x4, scoped, tag = 'scoped memory for tpu_custom_call.1']
    #allocation11 [shape = 'u8[4096]{0}', space=vmem, size = 0x1000, scoped, tag = 'output window, operand 0, single buffered']
    %12 = vsyncpa [#allocation4], 0
    %13 = vsyncpa [#allocation7], 0
    %14 = vsyncpa [#allocation10], 0
    %15 = vsyncpa [#allocation5], 0
    // Predicated region
    $region2: #{tpu_custom_call.1} parent=1 // pred_check
      _
    $region3: #{tpu_custom_call.1} parent=1 // pred_check_branch
      %17 = sbr.rel (0) target = $region5
    $region4: #{tpu_custom_call.1} parent=1 // pred_region
      %s19 = ssub.s32 128, 128
      %20 = vsyncadd [#allocation4], %s19
      %s22 = sshll.u32 [#allocation3], 4
      %s23 = int_to_ptr.vmem [resolvable:$true] %s22
      %25 = dma.hbm_to_vmem [thread:$0]  %s0, 128, %s23, [#allocation4]
    $region5: #{tpu_custom_call.1} parent=1 // pred_fallthru
      _
    // Predicated region
    $region6: #{tpu_custom_call.1} parent=1 // pred_check
      _
    $region7: #{tpu_custom_call.1} parent=1 // pred_check_branch
      %27 = sbr.rel (0) target = $region9
    $region8: #{tpu_custom_call.1} parent=1 // pred_region
      %s29 = ssub.s32 256, 256
      %30 = vsyncadd [#allocation7], %s29
      %s31 = sshll.u32 [#allocation6], 4
      %s32 = int_to_ptr.vmem [resolvable:$true] %s31
      %37 = dma.hbm_to_vmem [thread:$0]  %s1, 256, %s32, [#allocation7], 64, 64, 4
    $region9: #{tpu_custom_call.1} parent=1 // pred_fallthru
      _
    // Predicated region
    $region10: #{tpu_custom_call.1} parent=1 // pred_check
      _
    $region11: #{tpu_custom_call.1} parent=1 // pred_check_branch
      %39 = sbr.rel (0) target = $region13
    $region12: #{tpu_custom_call.1} parent=1 // pred_region
      _
    $region13: #{tpu_custom_call.1} parent=1 // pred_fallthru
      _
    // Predicated region
    $region14: #{tpu_custom_call.1} parent=1 // pred_check
      _
    $region15: #{tpu_custom_call.1} parent=1 // pred_check_branch
      %41 = sbr.rel (0) target = $region17
    $region16: #{tpu_custom_call.1} parent=1 // pred_region
      %s43 = ssub.s32 1024, 1024
      %44 = vsyncadd [#allocation7], %s43
      %s45 = sshll.u32 [#allocation8], 4
      %s46 = int_to_ptr.vmem [resolvable:$true] %s45
      %51 = dma.hbm_to_vmem [thread:$0]  %s3, 1024, %s46, [#allocation7], 64, 64, 4
    $region17: #{tpu_custom_call.1} parent=1 // pred_fallthru
      _
    // Predicated region
    $region18: #{tpu_custom_call.1} parent=1 // pred_check
      _
    $region19: #{tpu_custom_call.1} parent=1 // pred_check_branch
      %53 = sbr.rel (0) target = $region21
    $region20: #{tpu_custom_call.1} parent=1 // pred_region
      %s55 = ssub.s32 1024, 1024
      %56 = vsyncadd [#allocation10], %s55
      %s57 = sshll.u32 [#allocation9], 4
      %s58 = int_to_ptr.vmem [resolvable:$true] %s57
      %63 = dma.hbm_to_vmem [thread:$0]  %s4, 1024, %s58, [#allocation10], 64, 64, 4
    $region21: #{tpu_custom_call.1} parent=1 // pred_fallthru
      _
    // Predicated region
    $region22: #{tpu_custom_call.1} parent=1 // pred_check
      _
    $region23: #{tpu_custom_call.1} parent=1 // pred_check_branch
      %65 = sbr.rel (0) target = $region25
    $region24: #{tpu_custom_call.1} parent=1 // pred_region
      _
    $region25: #{tpu_custom_call.1} parent=1 // pred_fallthru
      _
    // Predicated region
    $region26: #{tpu_custom_call.1} parent=1 // pred_check
      _
    $region27: #{tpu_custom_call.1} parent=1 // pred_check_branch
      %67 = sbr.rel (0) target = $region29
    $region28: #{tpu_custom_call.1} parent=1 // pred_region
      %68 = dma.done [#allocation4], 128
    $region29: #{tpu_custom_call.1} parent=1 // pred_fallthru
      _
    // Predicated region
    $region30: #{tpu_custom_call.1} parent=1 // pred_check
      _
    $region31: #{tpu_custom_call.1} parent=1 // pred_check_branch
      %70 = sbr.rel (0) target = $region33
    $region32: #{tpu_custom_call.1} parent=1 // pred_region
      %71 = dma.done [#allocation7], 256
    $region33: #{tpu_custom_call.1} parent=1 // pred_fallthru
      _
    // Predicated region
    $region34: #{tpu_custom_call.1} parent=1 // pred_check
      _
    $region35: #{tpu_custom_call.1} parent=1 // pred_check_branch
      %73 = sbr.rel (0) target = $region37
    $region36: #{tpu_custom_call.1} parent=1 // pred_region
      %74 = dma.done [#allocation7], 1024
    $region37: #{tpu_custom_call.1} parent=1 // pred_fallthru
      _
    // Predicated region
    $region38: #{tpu_custom_call.1} parent=1 // pred_check
      _
    $region39: #{tpu_custom_call.1} parent=1 // pred_check_branch
      %76 = sbr.rel (0) target = $region41
    $region40: #{tpu_custom_call.1} parent=1 // pred_region
      %77 = dma.done [#allocation10], 1024
    $region41: #{tpu_custom_call.1} parent=1 // pred_fallthru
      _
    %s79 = sld [smem:[#allocation2]]
    %v80 = vld [vmem:[%s2] sm:$0x1]
    %v81 = vld [vmem:[%s2 + $0x1] sm:$0x1]
    %v82 = vld [vmem:[%s2 + $0x2] sm:$0x1]
    %v83 = vld [vmem:[%s2 + $0x3] sm:$0x1]
    %v84 = vld [vmem:[%s2 + $0x4] sm:$0x1]
    %v85 = vld [vmem:[#allocation3] sm:$0xff]
    %v86 = vpack.c.bf16 %v85, %v85
    %v87 = vld [vmem:[#allocation6] sm:$0xf]
    %v88 = vld [vmem:[#allocation6 + $0x4] sm:$0xf]
    %v89 = vld [vmem:[#allocation6 + $0x8] sm:$0xf]
    %v90 = vld [vmem:[#allocation6 + $0xc] sm:$0xf]
    %v91 = vlaneseq
    %v92 = vshrl.u32 %v91, 7
    %v93 = vsub.s32 0, %v92
    %v94 = vrot.slane %v80, %v93
    %v99 = vunpack.c.l.b16 %v87
    %v100 = vunpack.c.l.b16 %v88
    %v101 = vunpack.c.l.b16 %v89
    %v102 = vunpack.c.l.b16 %v90
    %v103 = vpack.c.b16 %v100, %v99
    %v104 = vpack.c.b16 %v102, %v101
    %vm107 = vcmask 261120
    %v109 = vsel %vm107, %v86, 0
    %111 = vmatprep.subr.bf16.mxu0 0
    %112 = vmatpush1.bf16.msra.mxu0 %v103
    %113 = vmatprep.subr.bf16.mxu0 0
    %114 = vmatpush1.bf16.msra.mxu0 %v104
    %115 = vmatprep.subr.bf16.mxu0 0
    %116 = vmatpush1.bf16.msra.mxu0 0
    %117 = vmatprep.subr.bf16.mxu0 0
    %118 = vmatpush1.bf16.msra.mxu0 0
    %119 = vmatprep.subr.bf16.mxu0 0
    %120 = vmatpush1.bf16.msra.mxu0 0
    %121 = vmatprep.subr.bf16.mxu0 0
    %122 = vmatpush1.bf16.msra.mxu0 0
    %123 = vmatprep.subr.bf16.mxu0 0
    %124 = vmatpush1.bf16.msra.mxu0 0
    %125 = vmatprep.subr.bf16.mxu0 0
    %126 = vmatpush1.bf16.msra.mxu0 0
    %127 = vmatprep.subr.bf16.mxu0 0
    %128 = vmatpush1.bf16.msra.mxu0 0
    %129 = vmatprep.subr.bf16.mxu0 0
    %130 = vmatpush1.bf16.msra.mxu0 0
    %131 = vmatprep.subr.bf16.mxu0 0
    %132 = vmatpush1.bf16.msra.mxu0 0
    %133 = vmatprep.subr.bf16.mxu0 0
    %134 = vmatpush1.bf16.msra.mxu0 0
    %135 = vmatprep.subr.bf16.mxu0 0
    %136 = vmatpush1.bf16.msra.mxu0 0
    %137 = vmatprep.subr.bf16.mxu0 0
    %138 = vmatpush1.bf16.msra.mxu0 0
    %139 = vmatprep.subr.bf16.mxu0 0
    %140 = vmatpush1.bf16.msra.mxu0 0
    %141 = vmatprep.subr.bf16.mxu0 0
    %142 = vmatpush1.bf16.msra.mxu0 0
    %143 = vmatprep.mubr.bf16.mxu0 0
    %144 = vmatmul.mubr.bf16.gmra.mrb[0].mxu0 %v109
    %v145 = vpop.f32.mrb[0].mxu0
    %v146 = vadd.f32 %v94, %v145
    %v147 = vpop.f32.mrb[0].mxu0
    %v148 = vpop.f32.mrb[0].mxu0
    %v149 = vpop.f32.mrb[0].mxu0
    %150 = vdwg.mxu0
    %151 = vadd.xlane.f32.xlu0 %v146
    %v152 = vpop.xlane.xlu0 %151
    %v153 = vrcp.pop 128.0
    %v154 = vmul.f32 %v152, %v153
    %v155 = vsub.f32 %v146, %v154
    %v156 = vmul.f32 %v155, %v155
    %157 = vadd.xlane.f32.xlu0 %v156
    %v158 = vpop.xlane.xlu0 %157
    %v159 = vmul.f32 %v158, %v153
    %v160 = vadd.f32 %v159, 1e-05
    %v161 = vrsqrt.pop %v160
    %v162 = vmul.f32 %v155, %v161
    %v163 = vlaneseq
    %v164 = vshrl.u32 %v163, 7
    %v165 = vsub.s32 0, %v164
    %v166 = vrot.slane %v81, %v165
    %v167 = vmul.f32 %v162, %v166
    %v168 = vlaneseq
    %v169 = vshrl.u32 %v168, 7
    %v170 = vsub.s32 0, %v169
    %v171 = vrot.slane %v82, %v170
    %v172 = vadd.f32 %v167, %v171
    %vm173 = vcmp.gt.f32.partialorder %v172, 0.0
    %v174 = vstv %s79
    %v175 = vmul.f32 %v174, %v172
    %v176 = vsel %vm173, %v172, %v175
    %v177 = vpack.c.bf16 %v176, %v176
    %v178 = vld [vmem:[#allocation8] sm:$0xf]
    %v179 = vld [vmem:[#allocation8 + $0x4] sm:$0xf]
    %v180 = vld [vmem:[#allocation8 + $0x8] sm:$0xf]
    %v181 = vld [vmem:[#allocation8 + $0xc] sm:$0xf]
    %v182 = vld [vmem:[#allocation8 + $0x10] sm:$0xf]
    %v183 = vld [vmem:[#allocation8 + $0x14] sm:$0xf]
    %v184 = vld [vmem:[#allocation8 + $0x18] sm:$0xf]
    %v185 = vld [vmem:[#allocation8 + $0x1c] sm:$0xf]
    %v186 = vld [vmem:[#allocation8 + $0x20] sm:$0xf]
    %v187 = vld [vmem:[#allocation8 + $0x24] sm:$0xf]
    %v188 = vld [vmem:[#allocation8 + $0x28] sm:$0xf]
    %v189 = vld [vmem:[#allocation8 + $0x2c] sm:$0xf]
    %v190 = vld [vmem:[#allocation8 + $0x30] sm:$0xf]
    %v191 = vld [vmem:[#allocation8 + $0x34] sm:$0xf]
    %v192 = vld [vmem:[#allocation8 + $0x38] sm:$0xf]
    %v193 = vld [vmem:[#allocation8 + $0x3c] sm:$0xf]
    %v194 = vlaneseq
    %v195 = vshrl.u32 %v194, 7
    %v196 = vsub.s32 0, %v195
    %v197 = vrot.slane %v83, %v196
    %v214 = vunpack.c.l.b16 %v178
    %v215 = vunpack.c.l.b16 %v179
    %v216 = vunpack.c.l.b16 %v180
    %v217 = vunpack.c.l.b16 %v181
    %v218 = vunpack.c.l.b16 %v182
    %v219 = vunpack.c.l.b16 %v183
    %v220 = vunpack.c.l.b16 %v184
    %v221 = vunpack.c.l.b16 %v185
    %v222 = vunpack.c.l.b16 %v186
    %v223 = vunpack.c.l.b16 %v187
    %v224 = vunpack.c.l.b16 %v188
    %v225 = vunpack.c.l.b16 %v189
    %v226 = vunpack.c.l.b16 %v190
    %v227 = vunpack.c.l.b16 %v191
    %v228 = vunpack.c.l.b16 %v192
    %v229 = vunpack.c.l.b16 %v193
    %v230 = vpack.c.b16 %v215, %v214
    %v231 = vpack.c.b16 %v217, %v216
    %v232 = vpack.c.b16 %v219, %v218
    %v233 = vpack.c.b16 %v221, %v220
    %v234 = vpack.c.b16 %v223, %v222
    %v235 = vpack.c.b16 %v225, %v224
    %v236 = vpack.c.b16 %v227, %v226
    %v237 = vpack.c.b16 %v229, %v228
    %246 = vmatprep.subr.bf16.mxu0 0
    %247 = vmatpush1.bf16.msra.mxu0 %v230
    %248 = vmatprep.subr.bf16.mxu0 0
    %249 = vmatpush1.bf16.msra.mxu0 %v231
    %250 = vmatprep.subr.bf16.mxu0 0
    %251 = vmatpush1.bf16.msra.mxu0 %v232
    %252 = vmatprep.subr.bf16.mxu0 0
    %253 = vmatpush1.bf16.msra.mxu0 %v233
    %254 = vmatprep.subr.bf16.mxu0 0
    %255 = vmatpush1.bf16.msra.mxu0 %v234
    %256 = vmatprep.subr.bf16.mxu0 0
    %257 = vmatpush1.bf16.msra.mxu0 %v235
    %258 = vmatprep.subr.bf16.mxu0 0
    %259 = vmatpush1.bf16.msra.mxu0 %v236
    %260 = vmatprep.subr.bf16.mxu0 0
    %261 = vmatpush1.bf16.msra.mxu0 %v237
    %262 = vmatprep.subr.bf16.mxu0 0
    %263 = vmatpush1.bf16.msra.mxu0 0
    %264 = vmatprep.subr.bf16.mxu0 0
    %265 = vmatpush1.bf16.msra.mxu0 0
    %266 = vmatprep.subr.bf16.mxu0 0
    %267 = vmatpush1.bf16.msra.mxu0 0
    %268 = vmatprep.subr.bf16.mxu0 0
    %269 = vmatpush1.bf16.msra.mxu0 0
    %270 = vmatprep.subr.bf16.mxu0 0
    %271 = vmatpush1.bf16.msra.mxu0 0
    %272 = vmatprep.subr.bf16.mxu0 0
    %273 = vmatpush1.bf16.msra.mxu0 0
    %274 = vmatprep.subr.bf16.mxu0 0
    %275 = vmatpush1.bf16.msra.mxu0 0
    %276 = vmatprep.subr.bf16.mxu0 0
    %277 = vmatpush1.bf16.msra.mxu0 0
    %278 = vmatprep.mubr.bf16.mxu0 0
    %279 = vmatmul.mubr.bf16.gmra.mrb[0].mxu0 %v177
    %v280 = vpop.f32.mrb[0].mxu0
    %v281 = vadd.f32 %v197, %v280
    %v282 = vpop.f32.mrb[0].mxu0
    %v283 = vpop.f32.mrb[0].mxu0
    %v284 = vpop.f32.mrb[0].mxu0
    %285 = vdwg.mxu0
    %vm286 = vcmp.gt.f32.partialorder %v281, 0.0
    %v287 = vmul.f32 %v174, %v281
    %v288 = vsel %vm286, %v281, %v287
    %v289 = vpack.c.bf16 %v288, %v288
    %v290 = vld [vmem:[#allocation9] sm:$0xf]
    %v291 = vld [vmem:[#allocation9 + $0x4] sm:$0xf]
    %v292 = vld [vmem:[#allocation9 + $0x8] sm:$0xf]
    %v293 = vld [vmem:[#allocation9 + $0xc] sm:$0xf]
    %v294 = vld [vmem:[#allocation9 + $0x10] sm:$0xf]
    %v295 = vld [vmem:[#allocation9 + $0x14] sm:$0xf]
    %v296 = vld [vmem:[#allocation9 + $0x18] sm:$0xf]
    %v297 = vld [vmem:[#allocation9 + $0x1c] sm:$0xf]
    %v298 = vld [vmem:[#allocation9 + $0x20] sm:$0xf]
    %v299 = vld [vmem:[#allocation9 + $0x24] sm:$0xf]
    %v300 = vld [vmem:[#allocation9 + $0x28] sm:$0xf]
    %v301 = vld [vmem:[#allocation9 + $0x2c] sm:$0xf]
    %v302 = vld [vmem:[#allocation9 + $0x30] sm:$0xf]
    %v303 = vld [vmem:[#allocation9 + $0x34] sm:$0xf]
    %v304 = vld [vmem:[#allocation9 + $0x38] sm:$0xf]
    %v305 = vld [vmem:[#allocation9 + $0x3c] sm:$0xf]
    %v306 = vlaneseq
    %v307 = vshrl.u32 %v306, 7
    %v308 = vsub.s32 0, %v307
    %v309 = vrot.slane %v84, %v308
    %v326 = vunpack.c.l.b16 %v290
    %v327 = vunpack.c.l.b16 %v291
    %v328 = vunpack.c.l.b16 %v292
    %v329 = vunpack.c.l.b16 %v293
    %v330 = vunpack.c.l.b16 %v294
    %v331 = vunpack.c.l.b16 %v295
    %v332 = vunpack.c.l.b16 %v296
    %v333 = vunpack.c.l.b16 %v297
    %v334 = vunpack.c.l.b16 %v298
    %v335 = vunpack.c.l.b16 %v299
    %v336 = vunpack.c.l.b16 %v300
    %v337 = vunpack.c.l.b16 %v301
    %v338 = vunpack.c.l.b16 %v302
    %v339 = vunpack.c.l.b16 %v303
    %v340 = vunpack.c.l.b16 %v304
    %v341 = vunpack.c.l.b16 %v305
    %v342 = vpack.c.b16 %v327, %v326
    %v343 = vpack.c.b16 %v329, %v328
    %v344 = vpack.c.b16 %v331, %v330
    %v345 = vpack.c.b16 %v333, %v332
    %v346 = vpack.c.b16 %v335, %v334
    %v347 = vpack.c.b16 %v337, %v336
    %v348 = vpack.c.b16 %v339, %v338
    %v349 = vpack.c.b16 %v341, %v340
    %358 = vmatprep.subr.bf16.mxu0 0
    %359 = vmatpush1.bf16.msra.mxu0 %v342
    %360 = vmatprep.subr.bf16.mxu0 0
    %361 = vmatpush1.bf16.msra.mxu0 %v343
    %362 = vmatprep.subr.bf16.mxu0 0
    %363 = vmatpush1.bf16.msra.mxu0 %v344
    %364 = vmatprep.subr.bf16.mxu0 0
    %365 = vmatpush1.bf16.msra.mxu0 %v345
    %366 = vmatprep.subr.bf16.mxu0 0
    %367 = vmatpush1.bf16.msra.mxu0 %v346
    %368 = vmatprep.subr.bf16.mxu0 0
    %369 = vmatpush1.bf16.msra.mxu0 %v347
    %370 = vmatprep.subr.bf16.mxu0 0
    %371 = vmatpush1.bf16.msra.mxu0 %v348
    %372 = vmatprep.subr.bf16.mxu0 0
    %373 = vmatpush1.bf16.msra.mxu0 %v349
    %374 = vmatprep.subr.bf16.mxu0 0
    %375 = vmatpush1.bf16.msra.mxu0 0
    %376 = vmatprep.subr.bf16.mxu0 0
    %377 = vmatpush1.bf16.msra.mxu0 0
    %378 = vmatprep.subr.bf16.mxu0 0
    %379 = vmatpush1.bf16.msra.mxu0 0
    %380 = vmatprep.subr.bf16.mxu0 0
    %381 = vmatpush1.bf16.msra.mxu0 0
    %382 = vmatprep.subr.bf16.mxu0 0
    %383 = vmatpush1.bf16.msra.mxu0 0
    %384 = vmatprep.subr.bf16.mxu0 0
    %385 = vmatpush1.bf16.msra.mxu0 0
    %386 = vmatprep.subr.bf16.mxu0 0
    %387 = vmatpush1.bf16.msra.mxu0 0
    %388 = vmatprep.subr.bf16.mxu0 0
    %389 = vmatpush1.bf16.msra.mxu0 0
    %390 = vmatprep.mubr.bf16.mxu0 0
    %391 = vmatmul.mubr.bf16.gmra.mrb[0].mxu0 %v289
    %v392 = vpop.f32.mrb[0].mxu0
    %v393 = vadd.f32 %v309, %v392
    %v394 = vpop.f32.mrb[0].mxu0
    %v395 = vpop.f32.mrb[0].mxu0
    %v396 = vpop.f32.mrb[0].mxu0
    %397 = vdwg.mxu0
    %398 = vst [vmem:[#allocation11] sm:$0xff] %v393
    // Predicated region
    $region42: #{tpu_custom_call.1} parent=1 // pred_check
      _
    $region43: #{tpu_custom_call.1} parent=1 // pred_check_branch
      %400 = sbr.rel (0) target = $region45
    $region44: #{tpu_custom_call.1} parent=1 // pred_region
      %s402 = ssub.s32 128, 128
      %403 = vsyncadd [#allocation5], %s402
      %s405 = sshll.u32 [#allocation11], 4
      %s406 = int_to_ptr.vmem [resolvable:$true] %s405
      %408 = dma.vmem_to_hbm [thread:$0]  %s406, 128, %s6, [#allocation5]
    $region45: #{tpu_custom_call.1} parent=1 // pred_fallthru
      _
    // Predicated region
    $region46: #{tpu_custom_call.1} parent=1 // pred_check
      _
    $region47: #{tpu_custom_call.1} parent=1 // pred_check_branch
      %410 = sbr.rel (0) target = $region49
    $region48: #{tpu_custom_call.1} parent=1 // pred_region
      %411 = dma.done [#allocation5], 128
    $region49: #{tpu_custom_call.1} parent=1 // pred_fallthru
      _
    %412 = vsyncpa [#allocation4], 1
    %413 = vsyncpa [#allocation7], 1
    %414 = vsyncpa [#allocation10], 1
    %415 = vsyncpa [#allocation5], 1

</llo_original>
